<compile_context>
chip_gen: v7x
topology: tpu7x:2x2x1
jax: 0.10.0
libtpu: 0.0.40
codegen_flags: <defaults>
</compile_context>

<pallas_src>
import functools
import math

import jax
import jax.numpy as jnp
from jax.experimental import pallas as pl
from jax.experimental.pallas import tpu as pltpu


def _round_up(x, m):
    return (x + m - 1) // m * m


def _cdiv(a, b):
    return (a + b - 1) // b


def _vmem_limit(ws_bytes):
    # 1.5x headroom over the estimated working set, clamped to a range that is
    # valid on every generation (v5e default 16 MiB, v7x physical 64 MiB).
    return int(min(max(int(ws_bytes * 1.5), 16 * 1024 * 1024), 40 * 1024 * 1024))


# --------------------------- stage 1: support = X @ W -----------------------
def _support_kernel(x_ref, w_ref, s_ref):
    s_ref[...] = jnp.dot(
        x_ref[...], w_ref[...], preferred_element_type=jnp.float32
    ).astype(s_ref.dtype)


# ---------- stage 2a: out = adj @ support (+ bias), support VMEM-resident ---
def _gcn_resident_kernel(*refs, n_valid, mask_cols, has_bias):
    if has_bias:
        adj_ref, s_ref, b_ref, o_ref = refs
    else:
        adj_ref, s_ref, o_ref = refs
        b_ref = None

    a = adj_ref[...]
    if mask_cols:
        # Zero the columns of the adj stripe that lie past the real N (the
        # block extends past the unpadded adjacency matrix).
        col_ids = jax.lax.broadcasted_iota(jnp.int32, a.shape, 1)
        a = jnp.where(col_ids < n_valid, a, 0)
    acc = jnp.dot(a.astype(jnp.float32), s_ref[...],
                  preferred_element_type=jnp.float32)
    if has_bias:
        acc = acc + b_ref[...]
    o_ref[...] = acc.astype(o_ref.dtype)


# ---------- stage 2b: out = adj @ support (+ bias), k-tiled reduction -------
def _gcn_ktiled_kernel(*refs, n_valid, tk, mask_cols, has_bias):
    if has_bias:
        adj_ref, s_ref, b_ref, o_ref = refs
    else:
        adj_ref, s_ref, o_ref = refs
        b_ref = None

    k = pl.program_id(1)

    @pl.when(k == 0)
    def _():
        # Accumulate directly into the (f32, k-resident) output block: the
        # bias is the initializer, so there is no scratch and no epilogue add.
        if has_bias:
            o_ref[...] = jnp.broadcast_to(b_ref[...], o_ref.shape).astype(o_ref.dtype)
        else:
            o_ref[...] = jnp.zeros_like(o_ref)

    a = adj_ref[...]
    if mask_cols:
        col_ids = k * tk + jax.lax.broadcasted_iota(jnp.int32, a.shape, 1)
        a = jnp.where(col_ids < n_valid, a, 0)
    o_ref[...] += jnp.dot(a.astype(jnp.float32), s_ref[...],
                          preferred_element_type=jnp.float32).astype(o_ref.dtype)


def graph_convolution(x, weight, adj, bias=None, *, tm=512, tk=512,
                      support_resident_bytes=16 * 1024 * 1024):
    """GCN layer: adj @ (x @ weight) + bias, as tiled Pallas TPU kernels."""
    n, f_in = x.shape
    f_out = weight.shape[1]
    adj_bpe = jnp.dtype(adj.dtype).itemsize
    f32 = jnp.float32

    # Lane-dense output features: pad only to the next multiple of 128.
    f_out_p = _round_up(f_out, 128)

    # Stage-2 tiles (128-multiples; clamp for small problems).
    tk = min(tk, _round_up(n, 128))
    tm = min(tm, _round_up(n, 128))
    # Guarantee >= 2 row tiles for mid/large N so the "parallel" row axis can
    # split across the two TensorCores of a v7x chip.
    if n > 2 * 128 and _cdiv(n, tm) < 2:
        tm = _round_up(_cdiv(n, 2), 128)
    n_cols_p = _round_up(n, tk)     # rows of support == reduction extent
    n_row_tiles = _cdiv(n, tm)

    # Stage-1 tiles (decoupled from stage-2 tiles; keep VMEM flat).
    tm1 = max(d for d in (512, 384, 256, 128) if n_cols_p % d == 0)
    tn1 = max(d for d in (512, 384, 256, 128) if f_out_p % d == 0)

    # Pad only the small operands.  adj (the O(N^2) stream) is never copied.
    if n == n_cols_p:
        x_p = x.astype(f32)
    else:
        x_p = jnp.zeros((n_cols_p, f_in), f32).at[:n, :].set(x.astype(f32))
    if f_out == f_out_p:
        w_p = weight.astype(f32)
    else:
        w_p = jnp.zeros((f_in, f_out_p), f32).at[:, :f_out].set(weight.astype(f32))
    has_bias = bias is not None
    if has_bias:
        if f_out == f_out_p:
            b_p = bias.reshape(1, f_out).astype(f32)
        else:
            b_p = jnp.zeros((1, f_out_p), f32).at[0, :f_out].set(bias.astype(f32))

    # ---- stage 1: support = X_pad @ W_pad  (f32, zero rows past N) --------
    # TODO(synk): for very large F_in add a k-reduction grid axis here instead
    # of contracting all of f_in in one block.
    ws1 = 2 * (tm1 * f_in + f_in * tn1 + tm1 * tn1) * 4
    support = pl.pallas_call(
        _support_kernel,
        out_shape=jax.ShapeDtypeStruct((n_cols_p, f_out_p), f32),
        grid_spec=pltpu.PrefetchScalarGridSpec(
            num_scalar_prefetch=0,
            grid=(n_cols_p // tm1, f_out_p // tn1),
            in_specs=[
                pl.BlockSpec((tm1, f_in), lambda i, j: (i, 0)),
                pl.BlockSpec((f_in, tn1), lambda i, j: (0, j)),
            ],
            out_specs=pl.BlockSpec((tm1, tn1), lambda i, j: (i, j)),
        ),
        compiler_params=pltpu.CompilerParams(
            dimension_semantics=("parallel", "parallel"),
            vmem_limit_bytes=_vmem_limit(ws1)),
        cost_estimate=pl.CostEstimate(
            flops=2 * n_cols_p * f_in * f_out_p,
            transcendentals=0,
            bytes_accessed=int(n_cols_p * f_in * 4
                               + (n_cols_p // tm1) * f_in * f_out_p * 4
                               + n_cols_p * f_out_p * 4)),
    )(x_p, w_p)

    mask_cols = n_cols_p != n   # adj column blocks overhang the real matrix

    # ---- stage 2: out = adj @ support (+ bias) -----------------------------
    ws_resident = (2 * tm * n_cols_p * adj_bpe      # adj stripe, double-buffered
                   + 2 * n_cols_p * f_out_p * 4     # resident support (conservative)
                   + 2 * tm * f_out_p * 4           # output block
                   + 2 * f_out_p * 4)               # bias
    use_resident = ws_resident <= support_resident_bytes

    out_shape = jax.ShapeDtypeStruct((n, f_out_p), f32)

    if use_resident:
        kernel = functools.partial(_gcn_resident_kernel, n_valid=n,
                                   mask_cols=mask_cols, has_bias=has_bias)
        in_specs = [
            pl.BlockSpec((tm, n_cols_p), lambda i: (i, 0)),        # adj stripe
            pl.BlockSpec((n_cols_p, f_out_p), lambda i: (0, 0)),   # support, resident
        ]
        if has_bias:
            in_specs.append(pl.BlockSpec((1, f_out_p), lambda i: (0, 0)))
        grid = (n_row_tiles,)
        out_spec = pl.BlockSpec((tm, f_out_p), lambda i: (i, 0))
        dim_sem = ("parallel",)
        bytes_accessed = (n * n * adj_bpe + n_cols_p * f_out_p * 4
                          + n * f_out_p * 4 + f_out_p * 4)
        vmem = _vmem_limit(ws_resident)
    else:
        kernel = functools.partial(_gcn_ktiled_kernel, n_valid=n, tk=tk,
                                   mask_cols=mask_cols, has_bias=has_bias)
        in_specs = [
            pl.BlockSpec((tm, tk), lambda i, k: (i, k)),           # adj tile
            pl.BlockSpec((tk, f_out_p), lambda i, k: (k, 0)),      # support tile
        ]
        if has_bias:
            in_specs.append(pl.BlockSpec((1, f_out_p), lambda i, k: (0, 0)))
        grid = (n_row_tiles, n_cols_p // tk)
        out_spec = pl.BlockSpec((tm, f_out_p), lambda i, k: (i, 0))
        dim_sem = ("parallel", "arbitrary")
        bytes_accessed = (n * n * adj_bpe
                          + n_row_tiles * n_cols_p * f_out_p * 4   # support re-reads
                          + n * f_out_p * 4
                          + n_row_tiles * f_out_p * 4)
        ws_ktiled = (2 * tm * tk * adj_bpe + 2 * tk * f_out_p * 4
                     + 2 * tm * f_out_p * 4 + 2 * f_out_p * 4)
        vmem = _vmem_limit(ws_ktiled)

    args = (adj, support, b_p) if has_bias else (adj, support)

    out = pl.pallas_call(
        kernel,
        out_shape=out_shape,
        grid_spec=pltpu.PrefetchScalarGridSpec(
            num_scalar_prefetch=0,
            grid=grid,
            in_specs=in_specs,
            out_specs=out_spec,
        ),
        compiler_params=pltpu.CompilerParams(
            dimension_semantics=dim_sem,
            vmem_limit_bytes=vmem),
        cost_estimate=pl.CostEstimate(
            flops=2 * n_row_tiles * tm * n_cols_p * f_out_p,
            transcendentals=0,
            bytes_accessed=int(bytes_accessed)),
    )(*args)

    # Rows are already exact (N); only strip the feature padding if any.
    return out if f_out == f_out_p else out[:, :f_out]


def reference(x, weight, adj, bias=None):
    out = adj @ (x @ weight)
    if bias is not None:
        out = out + bias[None, :]
    return out


if __name__ == "__main__":
    key = jax.random.PRNGKey(0)

    # --- case 1: small GCN layer (N=8, 16 -> 32), with bias -----------------
    # Hits the resident-support fast path and the ragged-column mask.
    N, F_IN, F_OUT = 8, 16, 32
    k_x, k_adj, k_w, k_b, k2 = jax.random.split(key, 5)

    x = jax.random.normal(k_x, (N, F_IN), dtype=jnp.float32)
    adj_raw = (jax.random.uniform(k_adj, (N, N)) > 0.6).astype(jnp.float32)
    adj_raw = adj_raw + jnp.eye(N, dtype=jnp.float32)
    adj = adj_raw / jnp.sum(adj_raw, axis=1, keepdims=True)

    stdv = 1.0 / math.sqrt(F_OUT)    # matches reset_parameters()
    weight = jax.random.uniform(k_w, (F_IN, F_OUT), dtype=jnp.float32,
                                minval=-stdv, maxval=stdv)
    bias = jax.random.uniform(k_b, (F_OUT,), dtype=jnp.float32,
                              minval=-stdv, maxval=stdv)

    out = jax.block_until_ready(graph_convolution(x, weight, adj, bias))
    ref = reference(x, weight, adj, bias)
    assert out.shape == (N, F_OUT)
    err = float(jnp.max(jnp.abs(out - ref)))
    assert err < 2e-2, f"case1 mismatch vs reference: max abs err {err}"

    # --- case 2: ragged N=300, no bias, force the k-tiled accumulation path -
    N2, F_IN2, F_OUT2 = 300, 48, 64
    kx2, ka2, kw2 = jax.random.split(k2, 3)
    x2 = jax.random.normal(kx2, (N2, F_IN2), dtype=jnp.float32)
    adj2_raw = (jax.random.uniform(ka2, (N2, N2)) > 0.9).astype(jnp.float32)
    adj2_raw = adj2_raw + jnp.eye(N2, dtype=jnp.float32)
    adj2 = adj2_raw / jnp.sum(adj2_raw, axis=1, keepdims=True)
    stdv2 = 1.0 / math.sqrt(F_OUT2)
    w2 = jax.random.uniform(kw2, (F_IN2, F_OUT2), dtype=jnp.float32,
                            minval=-stdv2, maxval=stdv2)

    out2 = jax.block_until_ready(
        graph_convolution(x2, w2, adj2, None, tm=128, tk=128,
                          support_resident_bytes=0))   # force k-tiled path
    ref2 = reference(x2, w2, adj2, None)
    assert out2.shape == (N2, F_OUT2)
    err2 = float(jnp.max(jnp.abs(out2 - ref2)))
    assert err2 < 2e-2, f"case2 mismatch vs reference: max abs err {err2}"

    print("KERNEL_OK")
</pallas_src>

<mosaic_0001>
module attributes {stable_mosaic.version = 11 : i64} {
  func.func @_support_kernel(%arg0: i32, %arg1: i32, %arg2: memref<128x16xf32, #tpu.memory_space<vmem>>, %arg3: memref<16x128xf32, #tpu.memory_space<vmem>>, %arg4: memref<128x128xf32, #tpu.memory_space<vmem>>) attributes {dimension_semantics = [#tpu.dimension_semantics<parallel>, #tpu.dimension_semantics<parallel>], iteration_bounds = array<i64: 1, 1>, scalar_prefetch = 0 : i64, scratch_operands = 0 : i64, tpu.core_type = #tpu.core_type<tc>, window_params = [{transform_indices = @transform_0, window_bounds = array<i64: 128, 16>}, {transform_indices = @transform_1, window_bounds = array<i64: 16, 128>}, {transform_indices = @transform_2, window_bounds = array<i64: 128, 128>}]} {
    %c0 = arith.constant 0 : index
    %c0_0 = arith.constant 0 : index
    %0 = vector.load %arg2[%c0, %c0_0] : memref<128x16xf32, #tpu.memory_space<vmem>>, vector<128x16xf32>
    %c0_1 = arith.constant 0 : index
    %c0_2 = arith.constant 0 : index
    %1 = vector.load %arg3[%c0_1, %c0_2] : memref<16x128xf32, #tpu.memory_space<vmem>>, vector<16x128xf32>
    %cst = arith.constant dense<0.000000e+00> : vector<128x128xf32>
    %2 = tpu.matmul %0, %1, %cst {dimension_numbers = #tpu.dot_dimension_numbers<[1], [0], [0], [1], [0, 0, 1, 1], [], []>} : vector<128x16xf32>, vector<16x128xf32>, vector<128x128xf32> -> vector<128x128xf32>
    %c0_3 = arith.constant 0 : index
    %c0_4 = arith.constant 0 : index
    %3 = vector.load %arg4[%c0_3, %c0_4] : memref<128x128xf32, #tpu.memory_space<vmem>>, vector<128x128xf32>
    tpu.vector_store %arg4[%c0_3, %c0_4], %2 {strides = array<i32>} : memref<128x128xf32, #tpu.memory_space<vmem>>, vector<128x128xf32>,
    return
  }
  func.func @transform_0(%arg0: i32, %arg1: i32) -> (i32, i32) {
    %c0_i32 = arith.constant 0 : i32
    %c0_i32_0 = arith.constant 0 : i32
    return %arg0, %c0_i32 : i32, i32
  }
  func.func @transform_1(%arg0: i32, %arg1: i32) -> (i32, i32) {
    %c0_i32 = arith.constant 0 : i32
    %c0_i32_0 = arith.constant 0 : i32
    return %c0_i32, %arg1 : i32, i32
  }
  func.func @transform_2(%arg0: i32, %arg1: i32) -> (i32, i32) {
    %c0_i32 = arith.constant 0 : i32
    return %arg0, %arg1 : i32, i32
  }
}

</mosaic_0001>

<llo_original>
// kernel: tpu_custom_call.1
$region0: #{tpu_custom_call.1}
  #allocation0 [shape = 'u32[]', space=smem, size = 0x4, offset = 0x4, fixed_abs, tag = 'smem constant byte address 0x4 - core index']
  #allocation1 [shape = 'u32[144,128]{1,0:T(1,128)}', space=vmem, size = 0x12000, scoped, tag = 'internal scratch']
  %s0 = inlined_call_operand.vmem [shape: f32[128,16], index: 0, kind: input, shape index: {}]
  %s1 = inlined_call_operand.vmem [shape: f32[16,128], index: 1, kind: input, shape index: {}]
  %s2 = inlined_call_operand.hbm [shape: f32[128,128], index: 2, kind: output, shape index: {}]
  %s3 = sld [smem:[#allocation0]]
  $region18: #{tpu_custom_call.1} parent=0
    _
  %s5 = ssub.s32 1, %s3
  %s6 = scalar_select 0, %s5, %s3
  $region1: #{tpu_custom_call.1} parent=0
    #allocation2 [shape = 'u8[65536]{0}', space=vmem, size = 0x10000, scoped, tag = 'output window, operand 0, single buffered']
    #allocation3 [shape = 's32[1]{0}', space=sflag, size = 0x4, scoped, tag = 'scoped memory for tpu_custom_call.1']
    %7 = vsyncpa [#allocation3], 0
    // Predicated region
    $region2: #{tpu_custom_call.1} parent=1 // pred_check
      _
    $region3: #{tpu_custom_call.1} parent=1 // pred_check_branch
      %9 = sbr.rel (0) target = $region5
    $region4: #{tpu_custom_call.1} parent=1 // pred_region
      _
    $region5: #{tpu_custom_call.1} parent=1 // pred_fallthru
      _
    // Predicated region
    $region6: #{tpu_custom_call.1} parent=1 // pred_check
      _
    $region7: #{tpu_custom_call.1} parent=1 // pred_check_branch
      %11 = sbr.rel (0) target = $region9
    $region8: #{tpu_custom_call.1} parent=1 // pred_region
      _
    $region9: #{tpu_custom_call.1} parent=1 // pred_fallthru
      _
    %v12 = vld [vmem:[%s0] sm:$0xff]
    %v13 = vld [vmem:[%s0 + $0x8] sm:$0xff]
    %v14 = vld [vmem:[%s0 + $0x10] sm:$0xff]
    %v15 = vld [vmem:[%s0 + $0x18] sm:$0xff]
    %v16 = vld [vmem:[%s0 + $0x20] sm:$0xff]
    %v17 = vld [vmem:[%s0 + $0x28] sm:$0xff]
    %v18 = vld [vmem:[%s0 + $0x30] sm:$0xff]
    %v19 = vld [vmem:[%s0 + $0x38] sm:$0xff]
    %v20 = vld [vmem:[%s0 + $0x40] sm:$0xff]
    %v21 = vld [vmem:[%s0 + $0x48] sm:$0xff]
    %v22 = vld [vmem:[%s0 + $0x50] sm:$0xff]
    %v23 = vld [vmem:[%s0 + $0x58] sm:$0xff]
    %v24 = vld [vmem:[%s0 + $0x60] sm:$0xff]
    %v25 = vld [vmem:[%s0 + $0x68] sm:$0xff]
    %v26 = vld [vmem:[%s0 + $0x70] sm:$0xff]
    %v27 = vld [vmem:[%s0 + $0x78] sm:$0xff]
    %v28 = vld [vmem:[%s1] sm:$0xff]
    %v29 = vld [vmem:[%s1 + $0x8] sm:$0xff]
    %vm30 = vcmask 130048
    %v32 = vsel %vm30, %v12, 0
    %v35 = vsel %vm30, %v13, 0
    %v38 = vsel %vm30, %v14, 0
    %v41 = vsel %vm30, %v15, 0
    %v44 = vsel %vm30, %v16, 0
    %v47 = vsel %vm30, %v17, 0
    %v50 = vsel %vm30, %v18, 0
    %v53 = vsel %vm30, %v19, 0
    %v56 = vsel %vm30, %v20, 0
    %v59 = vsel %vm30, %v21, 0
    %v62 = vsel %vm30, %v22, 0
    %v65 = vsel %vm30, %v23, 0
    %v68 = vsel %vm30, %v24, 0
    %v71 = vsel %vm30, %v25, 0
    %v74 = vsel %vm30, %v26, 0
    %v77 = vsel %vm30, %v27, 0
    %79 = vmatprep.subr.mxu0 0.0
    %80 = vmatpush1.msra.mxu0 %v28
    %81 = vmatprep.subr.mxu0 0.0
    %82 = vmatpush1.msra.mxu0 %v29
    %83 = vmatprep.subr.mxu0 0.0
    %84 = vmatpush1.msra.mxu0 0.0
    %85 = vmatprep.subr.mxu0 0.0
    %86 = vmatpush1.msra.mxu0 0.0
    %87 = vmatprep.subr.mxu0 0.0
    %88 = vmatpush1.msra.mxu0 0.0
    %89 = vmatprep.subr.mxu0 0.0
    %90 = vmatpush1.msra.mxu0 0.0
    %91 = vmatprep.subr.mxu0 0.0
    %92 = vmatpush1.msra.mxu0 0.0
    %93 = vmatprep.subr.mxu0 0.0
    %94 = vmatpush1.msra.mxu0 0.0
    %95 = vmatprep.subr.mxu0 0.0
    %96 = vmatpush1.msra.mxu0 0.0
    %97 = vmatprep.subr.mxu0 0.0
    %98 = vmatpush1.msra.mxu0 0.0
    %99 = vmatprep.subr.mxu0 0.0
    %100 = vmatpush1.msra.mxu0 0.0
    %101 = vmatprep.subr.mxu0 0.0
    %102 = vmatpush1.msra.mxu0 0.0
    %103 = vmatprep.subr.mxu0 0.0
    %104 = vmatpush1.msra.mxu0 0.0
    %105 = vmatprep.subr.mxu0 0.0
    %106 = vmatpush1.msra.mxu0 0.0
    %107 = vmatprep.subr.mxu0 0.0
    %108 = vmatpush1.msra.mxu0 0.0
    %109 = vmatprep.subr.mxu0 0.0
    %110 = vmatpush1.msra.mxu0 0.0
    %111 = vmatprep.subr.mxu0 0.0
    %112 = vmatpush1.msra.mxu0 0.0
    %113 = vmatprep.subr.mxu0 0.0
    %114 = vmatpush1.msra.mxu0 0.0
    %115 = vmatprep.subr.mxu0 0.0
    %116 = vmatpush1.msra.mxu0 0.0
    %117 = vmatprep.subr.mxu0 0.0
    %118 = vmatpush1.msra.mxu0 0.0
    %119 = vmatprep.subr.mxu0 0.0
    %120 = vmatpush1.msra.mxu0 0.0
    %121 = vmatprep.subr.mxu0 0.0
    %122 = vmatpush1.msra.mxu0 0.0
    %123 = vmatprep.subr.mxu0 0.0
    %124 = vmatpush1.msra.mxu0 0.0
    %125 = vmatprep.subr.mxu0 0.0
    %126 = vmatpush1.msra.mxu0 0.0
    %127 = vmatprep.subr.mxu0 0.0
    %128 = vmatpush1.msra.mxu0 0.0
    %129 = vmatprep.subr.mxu0 0.0
    %130 = vmatpush1.msra.mxu0 0.0
    %131 = vmatprep.subr.mxu0 0.0
    %132 = vmatpush1.msra.mxu0 0.0
    %133 = vmatprep.subr.mxu0 0.0
    %134 = vmatpush1.msra.mxu0 0.0
    %135 = vmatprep.subr.mxu0 0.0
    %136 = vmatpush1.msra.mxu0 0.0
    %137 = vmatprep.subr.mxu0 0.0
    %138 = vmatpush1.msra.mxu0 0.0
    %139 = vmatprep.subr.mxu0 0.0
    %140 = vmatpush1.msra.mxu0 0.0
    %141 = vmatprep.subr.mxu0 0.0
    %142 = vmatpush1.msra.mxu0 0.0
    %143 = vmatprep.mubr.f32.mxu0 0.0
    %144 = vmatmul.mubr.f32.gmra.mrb[0].mxu0 %v32
    %v145 = vpop.f32.mrb[0].mxu0
    %v146 = vadd.f32 0.0, %v145
    %v147 = vpop.f32.mrb[0].mxu0
    %148 = vmatprep.mubr.f32.mxu0 0.0
    %149 = vmatmul.mubr.f32.gmra.mrb[0].mxu0 %v35
    %v150 = vpop.f32.mrb[0].mxu0
    %v151 = vadd.f32 0.0, %v150
    %v152 = vpop.f32.mrb[0].mxu0
    %153 = vmatprep.mubr.f32.mxu0 0.0
    %154 = vmatmul.mubr.f32.gmra.mrb[0].mxu0 %v38
    %v155 = vpop.f32.mrb[0].mxu0
    %v156 = vadd.f32 0.0, %v155
    %v157 = vpop.f32.mrb[0].mxu0
    %158 = vmatprep.mubr.f32.mxu0 0.0
    %159 = vmatmul.mubr.f32.gmra.mrb[0].mxu0 %v41
    %v160 = vpop.f32.mrb[0].mxu0
    %v161 = vadd.f32 0.0, %v160
    %v162 = vpop.f32.mrb[0].mxu0
    %163 = vmatprep.mubr.f32.mxu0 0.0
    %164 = vmatmul.mubr.f32.gmra.mrb[0].mxu0 %v44
    %v165 = vpop.f32.mrb[0].mxu0
    %v166 = vadd.f32 0.0, %v165
    %v167 = vpop.f32.mrb[0].mxu0
    %168 = vmatprep.mubr.f32.mxu0 0.0
    %169 = vmatmul.mubr.f32.gmra.mrb[0].mxu0 %v47
    %v170 = vpop.f32.mrb[0].mxu0
    %v171 = vadd.f32 0.0, %v170
    %v172 = vpop.f32.mrb[0].mxu0
    %173 = vmatprep.mubr.f32.mxu0 0.0
    %174 = vmatmul.mubr.f32.gmra.mrb[0].mxu0 %v50
    %v175 = vpop.f32.mrb[0].mxu0
    %v176 = vadd.f32 0.0, %v175
    %v177 = vpop.f32.mrb[0].mxu0
    %178 = vmatprep.mubr.f32.mxu0 0.0
    %179 = vmatmul.mubr.f32.gmra.mrb[0].mxu0 %v53
    %v180 = vpop.f32.mrb[0].mxu0
    %v181 = vadd.f32 0.0, %v180
    %v182 = vpop.f32.mrb[0].mxu0
    %183 = vmatprep.mubr.f32.mxu0 0.0
    %184 = vmatmul.mubr.f32.gmra.mrb[0].mxu0 %v56
    %v185 = vpop.f32.mrb[0].mxu0
    %v186 = vadd.f32 0.0, %v185
    %v187 = vpop.f32.mrb[0].mxu0
    %188 = vmatprep.mubr.f32.mxu0 0.0
    %189 = vmatmul.mubr.f32.gmra.mrb[0].mxu0 %v59
    %v190 = vpop.f32.mrb[0].mxu0
    %v191 = vadd.f32 0.0, %v190
    %v192 = vpop.f32.mrb[0].mxu0
    %193 = vmatprep.mubr.f32.mxu0 0.0
    %194 = vmatmul.mubr.f32.gmra.mrb[0].mxu0 %v62
    %v195 = vpop.f32.mrb[0].mxu0
    %v196 = vadd.f32 0.0, %v195
    %v197 = vpop.f32.mrb[0].mxu0
    %198 = vmatprep.mubr.f32.mxu0 0.0
    %199 = vmatmul.mubr.f32.gmra.mrb[0].mxu0 %v65
    %v200 = vpop.f32.mrb[0].mxu0
    %v201 = vadd.f32 0.0, %v200
    %v202 = vpop.f32.mrb[0].mxu0
    %203 = vmatprep.mubr.f32.mxu0 0.0
    %204 = vmatmul.mubr.f32.gmra.mrb[0].mxu0 %v68
    %v205 = vpop.f32.mrb[0].mxu0
    %v206 = vadd.f32 0.0, %v205
    %v207 = vpop.f32.mrb[0].mxu0
    %208 = vmatprep.mubr.f32.mxu0 0.0
    %209 = vmatmul.mubr.f32.gmra.mrb[0].mxu0 %v71
    %v210 = vpop.f32.mrb[0].mxu0
    %v211 = vadd.f32 0.0, %v210
    %v212 = vpop.f32.mrb[0].mxu0
    %213 = vmatprep.mubr.f32.mxu0 0.0
    %214 = vmatmul.mubr.f32.gmra.mrb[0].mxu0 %v74
    %v215 = vpop.f32.mrb[0].mxu0
    %v216 = vadd.f32 0.0, %v215
    %v217 = vpop.f32.mrb[0].mxu0
    %218 = vmatprep.mubr.f32.mxu0 0.0
    %219 = vmatmul.mubr.f32.gmra.mrb[0].mxu0 %v77
    %v220 = vpop.f32.mrb[0].mxu0
    %v221 = vadd.f32 0.0, %v220
    %v222 = vpop.f32.mrb[0].mxu0
    %223 = vdwg.mxu0
    %224 = vst [vmem:[#allocation2] sm:$0xff] %v146
    %225 = vst [vmem:[#allocation2 + $0x8] sm:$0xff] %v151
    %226 = vst [vmem:[#allocation2 + $0x10] sm:$0xff] %v156
    %227 = vst [vmem:[#allocation2 + $0x18] sm:$0xff] %v161
    %228 = vst [vmem:[#allocation2 + $0x20] sm:$0xff] %v166
    %229 = vst [vmem:[#allocation2 + $0x28] sm:$0xff] %v171
    %230 = vst [vmem:[#allocation2 + $0x30] sm:$0xff] %v176
    %231 = vst [vmem:[#allocation2 + $0x38] sm:$0xff] %v181
    %232 = vst [vmem:[#allocation2 + $0x40] sm:$0xff] %v186
    %233 = vst [vmem:[#allocation2 + $0x48] sm:$0xff] %v191
    %234 = vst [vmem:[#allocation2 + $0x50] sm:$0xff] %v196
    %235 = vst [vmem:[#allocation2 + $0x58] sm:$0xff] %v201
    %236 = vst [vmem:[#allocation2 + $0x60] sm:$0xff] %v206
    %237 = vst [vmem:[#allocation2 + $0x68] sm:$0xff] %v211
    %238 = vst [vmem:[#allocation2 + $0x70] sm:$0xff] %v216
    %239 = vst [vmem:[#allocation2 + $0x78] sm:$0xff] %v221
    // Predicated region
    $region10: #{tpu_custom_call.1} parent=1 // pred_check
      _
    $region11: #{tpu_custom_call.1} parent=1 // pred_check_branch
      %241 = sbr.rel (0) target = $region13
    $region12: #{tpu_custom_call.1} parent=1 // pred_region
      %s243 = ssub.s32 2048, 2048
      %244 = vsyncadd [#allocation3], %s243
      %s245 = sshll.u32 [#allocation2], 4
      %s246 = int_to_ptr.vmem [resolvable:$true] %s245
      %251 = dma.vmem_to_hbm [thread:$0]  %s246, 2048, %s2, [#allocation3], 128, 128, 8
    $region13: #{tpu_custom_call.1} parent=1 // pred_fallthru
      _
    // Predicated region
    $region14: #{tpu_custom_call.1} parent=1 // pred_check
      _
    $region15: #{tpu_custom_call.1} parent=1 // pred_check_branch
      %253 = sbr.rel (0) target = $region17
    $region16: #{tpu_custom_call.1} parent=1 // pred_region
      %254 = dma.done [#allocation3], 2048
    $region17: #{tpu_custom_call.1} parent=1 // pred_fallthru
      _
    %255 = vsyncpa [#allocation3], 1

</llo_original>
